<compile_context>
chip_gen: v5e
topology: v5e:2x2
jax: 0.10.0
libtpu: 0.0.40
codegen_flags: <defaults>
</compile_context>

<pallas_src>
import jax
import jax.numpy as jnp
from jax.experimental import pallas as pl
from jax.experimental.pallas import tpu as pltpu

A_PAD = 128      # lane-dense padded output width (unmasked full-lane vst)
BM_CAP = 512     # max batch rows per grid step


def _r8(n: int) -> int:
    return ((n + 7) // 8) * 8


def _num_tensorcores() -> int:
    """2 on dual-TensorCore chips (v7x), else 1. Heuristic with safe fallback."""
    try:
        kind = jax.devices()[0].device_kind.lower()
    except Exception:
        return 1
    return 2 if ("v7" in kind or "tpu7" in kind) else 1


def rl_actor_kernel(sf_ref, pos_ref, spr_ref, w1_ref, w2_ref, o_ref):
    """sf: (BM, Fp); pos/spr: (BM, Ap);
    w1 slab: (Fp + 2*Ap + 8, Hp)  rows = [sig_eff | pos | spr | bias block]
    w2 slab: (Hp + 8, A_PAD)      rows = [weights | bias block], cols >= A are zero."""
    Fp = sf_ref.shape[1]
    Ap = pos_ref.shape[1]
    Hp = w2_ref.shape[0] - 8

    w1_sig = w1_ref[0:Fp, :]
    w1_pos = w1_ref[Fp:Fp + Ap, :]
    w1_spr = w1_ref[Fp + Ap:Fp + 2 * Ap, :]
    b1 = w1_ref[Fp + 2 * Ap:Fp + 2 * Ap + 1, :]

    w2 = w2_ref[0:Hp, :]
    b2 = w2_ref[Hp:Hp + 1, :]

    # fc_shared (frozen predictor folded into the signal block) + ReLU
    h = jnp.dot(sf_ref[...], w1_sig, preferred_element_type=jnp.float32)
    h = h + jnp.dot(pos_ref[...], w1_pos, preferred_element_type=jnp.float32)
    h = h + jnp.dot(spr_ref[...], w1_spr, preferred_element_type=jnp.float32)
    h = jnp.maximum(h + b1, 0.0)

    # fc_out + tanh  (padded columns: tanh(0 + 0) = 0, harmless for L1 sum)
    v = jnp.tanh(jnp.dot(h, w2, preferred_element_type=jnp.float32) + b2)

    # per-state L1 normalization: a = v / (sum |v| + 1e-8); reciprocal -> EUP
    denom = jnp.sum(jnp.abs(v), axis=-1, keepdims=True) + 1e-8
    o_ref[...] = v * pl.reciprocal(denom, approx=False)


def init_params(key, n_assets, feat_dim, hidden_dim):
    """Raw module parameters, stored (in, out) so every Linear is x @ W + b."""
    ks = jax.random.split(key, 6)
    wp = jax.random.normal(ks[0], (feat_dim, n_assets), jnp.float32) * 0.1     # frozen predictor
    bp = jax.random.normal(ks[1], (1, n_assets), jnp.float32) * 0.1
    w1 = jax.random.normal(ks[2], (3 * n_assets, hidden_dim), jnp.float32) * 0.1  # fc_shared
    b1 = jax.random.normal(ks[3], (1, hidden_dim), jnp.float32) * 0.1
    w2 = jax.random.normal(ks[4], (hidden_dim, n_assets), jnp.float32) * 0.1      # fc_out
    b2 = jax.random.normal(ks[5], (1, n_assets), jnp.float32) * 0.1
    return wp, bp, w1, b1, w2, b2


def pack_params(raw_params):
    """Fold the frozen predictor into fc_shared and pack into 2 tile-aligned slabs."""
    wp, bp, w1, b1, w2, b2 = raw_params
    F, A = wp.shape
    H = w1.shape[1]
    Fp, Ap, Hp = _r8(F), _r8(A), _r8(H)

    w1_sig, w1_pos, w1_spr = w1[:A], w1[A:2 * A], w1[2 * A:]
    w1_sig_eff = wp @ w1_sig                      # (F, H)
    b1_eff = bp @ w1_sig + b1                     # (1, H)

    # W1 slab: rows [0:Fp)=signal_eff, [Fp:Fp+Ap)=position, [Fp+Ap:Fp+2Ap)=spread,
    #          row Fp+2Ap = bias (8-row block, zero-filled). All splits %8 == 0.
    w1p = jnp.zeros((Fp + 2 * Ap + 8, Hp), jnp.float32)
    w1p = w1p.at[0:F, 0:H].set(w1_sig_eff)
    w1p = w1p.at[Fp:Fp + A, 0:H].set(w1_pos)
    w1p = w1p.at[Fp + Ap:Fp + Ap + A, 0:H].set(w1_spr)
    w1p = w1p.at[Fp + 2 * Ap, 0:H].set(b1_eff[0])

    # W2 slab: rows [0:Hp)=weights, row Hp = bias; columns >= A are zero.
    w2p = jnp.zeros((Hp + 8, A_PAD), jnp.float32)
    w2p = w2p.at[0:H, 0:A].set(w2)
    w2p = w2p.at[Hp, 0:A].set(b2[0])
    return w1p, w2p


def _forward_impl(signal_features, position, spread, packed_params):
    w1p, w2p = packed_params
    B, F = signal_features.shape
    A = position.shape[-1]
    Fp, Ap = _r8(F), _r8(A)

    sf = signal_features.astype(jnp.float32)
    pos = position.astype(jnp.float32)
    spr = spread.astype(jnp.float32)

    # Pad feature dims only if misaligned (no-op for the default shapes).
    if F != Fp:
        sf = jnp.pad(sf, ((0, 0), (0, Fp - F)))
    if A != Ap:
        pos = jnp.pad(pos, ((0, 0), (0, Ap - A)))
        spr = jnp.pad(spr, ((0, 0), (0, Ap - A)))

    # Adaptive BM: one grid step per TensorCore, capped; min 8 rows (f32 sublane).
    num_tc = _num_tensorcores()
    b8 = _r8(B)
    bm = min(BM_CAP, _r8(-(-b8 // num_tc)))
    grid = -(-b8 // bm)
    b_pad = grid * bm
    if b_pad != B:
        sf = jnp.pad(sf, ((0, b_pad - B), (0, 0)))
        pos = jnp.pad(pos, ((0, b_pad - B), (0, 0)))
        spr = jnp.pad(spr, ((0, b_pad - B), (0, 0)))

    out = pl.pallas_call(
        rl_actor_kernel,
        out_shape=jax.ShapeDtypeStruct((b_pad, A_PAD), jnp.float32),
        grid=(grid,),
        in_specs=[
            pl.BlockSpec((bm, Fp), lambda i: (i, 0)),     # activations: tile over batch
            pl.BlockSpec((bm, Ap), lambda i: (i, 0)),
            pl.BlockSpec((bm, Ap), lambda i: (i, 0)),
            pl.BlockSpec(w1p.shape, lambda i: (0, 0)),    # weights: VMEM-resident across grid
            pl.BlockSpec(w2p.shape, lambda i: (0, 0)),
        ],
        out_specs=pl.BlockSpec((bm, A_PAD), lambda i: (i, 0)),
        compiler_params=pltpu.CompilerParams(
            dimension_semantics=("parallel",)),
    )(sf, pos, spr, w1p, w2p)
    return out[:B, :A]


# jit so the (rarely needed) pads and the final slice fuse around the kernel.
rl_actor_forward_batched = jax.jit(_forward_impl)


def rl_actor_forward(signal_features, position, spread, packed_params):
    """Single-state forward (original module semantics): 1D inputs -> (n_assets,)."""
    out = rl_actor_forward_batched(signal_features[None, :], position[None, :],
                                   spread[None, :], packed_params)
    return out[0]


def reference_forward_batched(signal_features, position, spread, raw_params):
    """Pure-JAX reference using the *unfolded* original parameters."""
    wp, bp, w1, b1, w2, b2 = raw_params
    sig = signal_features @ wp + bp
    x = jnp.concatenate([sig, position, spread], axis=-1)
    h = jnp.maximum(x @ w1 + b1, 0.0)
    v = jnp.tanh(h @ w2 + b2)
    return v / (jnp.sum(jnp.abs(v), axis=-1, keepdims=True) + 1e-8)


if __name__ == "__main__":
    n_assets, feat_dim, hidden_dim = 8, 16, 32
    batch = 128

    key = jax.random.PRNGKey(0)
    k_sf, k_pos, k_spr, k_params = jax.random.split(key, 4)

    sf_b = jax.random.normal(k_sf, (batch, feat_dim), jnp.float32)
    pos_b = jax.random.normal(k_pos, (batch, n_assets), jnp.float32)
    spr_b = jax.random.uniform(k_spr, (batch, n_assets), jnp.float32) * 0.01

    raw_params = init_params(k_params, n_assets, feat_dim, hidden_dim)
    packed_params = pack_params(raw_params)

    # Batched evaluation (128 actor states per call).
    actions = jax.block_until_ready(
        rl_actor_forward_batched(sf_b, pos_b, spr_b, packed_params))
    ref = reference_forward_batched(sf_b, pos_b, spr_b, raw_params)
    assert actions.shape == (batch, n_assets)
    assert jnp.allclose(actions, ref, atol=1e-5, rtol=1e-4), (actions[0], ref[0])
    assert float(jnp.max(jnp.abs(jnp.sum(jnp.abs(actions), axis=-1) - 1.0))) < 1e-4

    # Single-state path (original RlActor.forward semantics): pads only to 8 rows now.
    a1 = jax.block_until_ready(
        rl_actor_forward(sf_b[0], pos_b[0], spr_b[0], packed_params))
    assert a1.shape == (n_assets,)
    assert jnp.allclose(a1, ref[0], atol=1e-5, rtol=1e-4), (a1, ref[0])

    print("KERNEL_OK")
</pallas_src>

<mosaic_0001>
module attributes {stable_mosaic.version = 11 : i64} {
  func.func @rl_actor_kernel(%arg0: i32, %arg1: memref<128x16xf32, #tpu.memory_space<vmem>>, %arg2: memref<128x8xf32, #tpu.memory_space<vmem>>, %arg3: memref<128x8xf32, #tpu.memory_space<vmem>>, %arg4: memref<40x32xf32, #tpu.memory_space<vmem>>, %arg5: memref<40x128xf32, #tpu.memory_space<vmem>>, %arg6: memref<128x128xf32, #tpu.memory_space<vmem>>) attributes {dimension_semantics = [#tpu.dimension_semantics<parallel>], iteration_bounds = array<i64: 1>, scalar_prefetch = 0 : i64, scratch_operands = 0 : i64, tpu.core_type = #tpu.core_type<tc>, window_params = [{transform_indices = @transform_0, window_bounds = array<i64: 128, 16>}, {transform_indices = @transform_1, window_bounds = array<i64: 128, 8>}, {transform_indices = @transform_2, window_bounds = array<i64: 128, 8>}, {pipeline_mode = #tpu.pipeline_mode<synchronous>, transform_indices = @transform_3, window_bounds = array<i64: 40, 32>}, {pipeline_mode = #tpu.pipeline_mode<synchronous>, transform_indices = @transform_4, window_bounds = array<i64: 40, 128>}, {transform_indices = @transform_5, window_bounds = array<i64: 128, 128>}]} {
    %c0 = arith.constant 0 : index
    %c0_0 = arith.constant 0 : index
    %0 = vector.load %arg4[%c0, %c0_0] : memref<40x32xf32, #tpu.memory_space<vmem>>, vector<16x32xf32>
    %c16 = arith.constant 16 : index
    %c0_1 = arith.constant 0 : index
    %1 = vector.load %arg4[%c16, %c0_1] : memref<40x32xf32, #tpu.memory_space<vmem>>, vector<8x32xf32>
    %c24 = arith.constant 24 : index
    %c0_2 = arith.constant 0 : index
    %2 = vector.load %arg4[%c24, %c0_2] : memref<40x32xf32, #tpu.memory_space<vmem>>, vector<8x32xf32>
    %c32 = arith.constant 32 : index
    %c0_3 = arith.constant 0 : index
    %3 = vector.load %arg4[%c32, %c0_3] : memref<40x32xf32, #tpu.memory_space<vmem>>, vector<1x32xf32>
    %c0_4 = arith.constant 0 : index
    %c0_5 = arith.constant 0 : index
    %4 = vector.load %arg5[%c0_4, %c0_5] : memref<40x128xf32, #tpu.memory_space<vmem>>, vector<32x128xf32>
    %c32_6 = arith.constant 32 : index
    %c0_7 = arith.constant 0 : index
    %5 = vector.load %arg5[%c32_6, %c0_7] : memref<40x128xf32, #tpu.memory_space<vmem>>, vector<1x128xf32>
    %c0_8 = arith.constant 0 : index
    %c0_9 = arith.constant 0 : index
    %6 = vector.load %arg1[%c0_8, %c0_9] : memref<128x16xf32, #tpu.memory_space<vmem>>, vector<128x16xf32>
    %cst = arith.constant dense<0.000000e+00> : vector<128x32xf32>
    %7 = tpu.matmul %6, %0, %cst {dimension_numbers = #tpu.dot_dimension_numbers<[1], [0], [0], [1], [0, 0, 1, 1], [], []>} : vector<128x16xf32>, vector<16x32xf32>, vector<128x32xf32> -> vector<128x32xf32>
    %c0_10 = arith.constant 0 : index
    %c0_11 = arith.constant 0 : index
    %8 = vector.load %arg2[%c0_10, %c0_11] : memref<128x8xf32, #tpu.memory_space<vmem>>, vector<128x8xf32>
    %cst_12 = arith.constant dense<0.000000e+00> : vector<128x32xf32>
    %9 = tpu.matmul %8, %1, %cst_12 {dimension_numbers = #tpu.dot_dimension_numbers<[1], [0], [0], [1], [0, 0, 1, 1], [], []>} : vector<128x8xf32>, vector<8x32xf32>, vector<128x32xf32> -> vector<128x32xf32>
    %10 = arith.addf %7, %9 : vector<128x32xf32>
    %c0_13 = arith.constant 0 : index
    %c0_14 = arith.constant 0 : index
    %11 = vector.load %arg3[%c0_13, %c0_14] : memref<128x8xf32, #tpu.memory_space<vmem>>, vector<128x8xf32>
    %cst_15 = arith.constant dense<0.000000e+00> : vector<128x32xf32>
    %12 = tpu.matmul %11, %2, %cst_15 {dimension_numbers = #tpu.dot_dimension_numbers<[1], [0], [0], [1], [0, 0, 1, 1], [], []>} : vector<128x8xf32>, vector<8x32xf32>, vector<128x32xf32> -> vector<128x32xf32>
    %13 = arith.addf %10, %12 : vector<128x32xf32>
    %14 = vector.broadcast %3 : vector<1x32xf32> to vector<128x32xf32>
    %15 = arith.addf %13, %14 : vector<128x32xf32>
    %cst_16 = arith.constant 0.000000e+00 : f32
    %16 = vector.broadcast %cst_16 : f32 to vector<128x32xf32>
    %17 = arith.maximumf %15, %16 : vector<128x32xf32>
    %cst_17 = arith.constant dense<0.000000e+00> : vector<128x128xf32>
    %18 = tpu.matmul %17, %4, %cst_17 {dimension_numbers = #tpu.dot_dimension_numbers<[1], [0], [0], [1], [0, 0, 1, 1], [], []>} : vector<128x32xf32>, vector<32x128xf32>, vector<128x128xf32> -> vector<128x128xf32>
    %19 = vector.broadcast %5 : vector<1x128xf32> to vector<128x128xf32>
    %20 = arith.addf %18, %19 : vector<128x128xf32>
    %21 = math.tanh %20 : vector<128x128xf32>
    %22 = math.absf %21 : vector<128x128xf32>
    %cst_18 = arith.constant dense<0.000000e+00> : vector<128xf32>
    %23 = vector.multi_reduction <add>, %22, %cst_18 [1] : vector<128x128xf32> to vector<128xf32>
    %24 = vector.shape_cast %23 : vector<128xf32> to vector<128x1xf32>
    %cst_19 = arith.constant 9.99999993E-9 : f32
    %25 = vector.broadcast %cst_19 : f32 to vector<128x1xf32>
    %26 = arith.addf %24, %25 : vector<128x1xf32>
    %27 = tpu.reciprocal %26 : vector<128x1xf32> -> vector<128x1xf32>
    %28 = vector.broadcast %27 : vector<128x1xf32> to vector<128x128xf32>
    %29 = arith.mulf %21, %28 : vector<128x128xf32>
    %c0_20 = arith.constant 0 : index
    %c0_21 = arith.constant 0 : index
    %30 = vector.load %arg6[%c0_20, %c0_21] : memref<128x128xf32, #tpu.memory_space<vmem>>, vector<128x128xf32>
    tpu.vector_store %arg6[%c0_20, %c0_21], %29 {strides = array<i32>} : memref<128x128xf32, #tpu.memory_space<vmem>>, vector<128x128xf32>,
    return
  }
  func.func @transform_0(%arg0: i32) -> (i32, i32) {
    %c0_i32 = arith.constant 0 : i32
    %c0_i32_0 = arith.constant 0 : i32
    return %arg0, %c0_i32 : i32, i32
  }
  func.func @transform_1(%arg0: i32) -> (i32, i32) {
    %c0_i32 = arith.constant 0 : i32
    %c0_i32_0 = arith.constant 0 : i32
    return %arg0, %c0_i32 : i32, i32
  }
  func.func @transform_2(%arg0: i32) -> (i32, i32) {
    %c0_i32 = arith.constant 0 : i32
    %c0_i32_0 = arith.constant 0 : i32
    return %arg0, %c0_i32 : i32, i32
  }
  func.func @transform_3(%arg0: i32) -> (i32, i32) {
    %c0_i32 = arith.constant 0 : i32
    %c0_i32_0 = arith.constant 0 : i32
    %c0_i32_1 = arith.constant 0 : i32
    return %c0_i32, %c0_i32_0 : i32, i32
  }
  func.func @transform_4(%arg0: i32) -> (i32, i32) {
    %c0_i32 = arith.constant 0 : i32
    %c0_i32_0 = arith.constant 0 : i32
    %c0_i32_1 = arith.constant 0 : i32
    return %c0_i32, %c0_i32_0 : i32, i32
  }
  func.func @transform_5(%arg0: i32) -> (i32, i32) {
    %c0_i32 = arith.constant 0 : i32
    %c0_i32_0 = arith.constant 0 : i32
    return %arg0, %c0_i32 : i32, i32
  }
}

</mosaic_0001>

<llo_original>
// kernel: _forward_impl.1
$region0: #{_forward_impl.1}
  #allocation0 [shape = 'u32[]', space=smem, size = 0x4, offset = 0x4, fixed_abs, tag = 'smem constant byte address 0x4 - core index']
  #allocation1 [shape = 'u32[72,128]{1,0:T(1,128)}', space=vmem, size = 0x9000, scoped, tag = 'internal scratch']
  %s0 = inlined_call_operand.vmem [shape: f32[128,16], index: 0, kind: input, shape index: {}]
  %s1 = inlined_call_operand.vmem [shape: f32[128,8], index: 1, kind: input, shape index: {}]
  %s2 = inlined_call_operand.vmem [shape: f32[128,8], index: 2, kind: input, shape index: {}]
  %s3 = inlined_call_operand.vmem [shape: f32[40,32], index: 3, kind: input, shape index: {}]
  %s4 = inlined_call_operand.vmem [shape: f32[40,128], index: 4, kind: input, shape index: {}]
  %s5 = inlined_call_operand.vmem [shape: f32[128,128], index: 5, kind: output, shape index: {}]
  %s6 = sld [smem:[#allocation0]]
  $region30: #{_forward_impl.1} parent=0
    _
  %s8 = ssub.s32 1, %s6
  %s9 = scalar_select 0, %s8, %s6
  // Predicated region
  $region2: #{_forward_impl.1} parent=0 // pred_check
    _
  $region3: #{_forward_impl.1} parent=0 // pred_check_branch
    %11 = sbr.rel (0) target = $region5
  $region4: #{_forward_impl.1} parent=0 // pred_region
    _
  $region5: #{_forward_impl.1} parent=0 // pred_fallthru
    _
  // Predicated region
  $region6: #{_forward_impl.1} parent=0 // pred_check
    _
  $region7: #{_forward_impl.1} parent=0 // pred_check_branch
    %13 = sbr.rel (0) target = $region9
  $region8: #{_forward_impl.1} parent=0 // pred_region
    _
  $region9: #{_forward_impl.1} parent=0 // pred_fallthru
    _
  // Predicated region
  $region10: #{_forward_impl.1} parent=0 // pred_check
    _
  $region11: #{_forward_impl.1} parent=0 // pred_check_branch
    %15 = sbr.rel (0) target = $region13
  $region12: #{_forward_impl.1} parent=0 // pred_region
    _
  $region13: #{_forward_impl.1} parent=0 // pred_fallthru
    _
  // Predicated region
  $region14: #{_forward_impl.1} parent=0 // pred_check
    _
  $region15: #{_forward_impl.1} parent=0 // pred_check_branch
    %17 = sbr.rel (0) target = $region17
  $region16: #{_forward_impl.1} parent=0 // pred_region
    _
  $region17: #{_forward_impl.1} parent=0 // pred_fallthru
    _
  // Predicated region
  $region18: #{_forward_impl.1} parent=0 // pred_check
    _
  $region19: #{_forward_impl.1} parent=0 // pred_check_branch
    %19 = sbr.rel (0) target = $region21
  $region20: #{_forward_impl.1} parent=0 // pred_region
    _
  $region21: #{_forward_impl.1} parent=0 // pred_fallthru
    _
  %v20 = vld [vmem:[%s3] sm:$0xff]
  %v21 = vld [vmem:[%s3 + $0x8] sm:$0xff]
  %v22 = vld [vmem:[%s3 + $0x10] sm:$0xff]
  %v23 = vld [vmem:[%s3 + $0x18] sm:$0xff]
  %v24 = vld [vmem:[%s3 + $0x20] sm:$0x1]
  %v25 = vld [vmem:[%s4] sm:$0xff]
  %v26 = vld [vmem:[%s4 + $0x8] sm:$0xff]
  %v27 = vld [vmem:[%s4 + $0x10] sm:$0xff]
  %v28 = vld [vmem:[%s4 + $0x18] sm:$0xff]
  %v29 = vld [vmem:[%s4 + $0x20] sm:$0x1]
  %v30 = vld [vmem:[%s0] sm:$0xff]
  %v31 = vld [vmem:[%s0 + $0x8] sm:$0xff]
  %v32 = vld [vmem:[%s0 + $0x10] sm:$0xff]
  %v33 = vld [vmem:[%s0 + $0x18] sm:$0xff]
  %v34 = vld [vmem:[%s0 + $0x20] sm:$0xff]
  %v35 = vld [vmem:[%s0 + $0x28] sm:$0xff]
  %v36 = vld [vmem:[%s0 + $0x30] sm:$0xff]
  %v37 = vld [vmem:[%s0 + $0x38] sm:$0xff]
  %v38 = vld [vmem:[%s0 + $0x40] sm:$0xff]
  %v39 = vld [vmem:[%s0 + $0x48] sm:$0xff]
  %v40 = vld [vmem:[%s0 + $0x50] sm:$0xff]
  %v41 = vld [vmem:[%s0 + $0x58] sm:$0xff]
  %v42 = vld [vmem:[%s0 + $0x60] sm:$0xff]
  %v43 = vld [vmem:[%s0 + $0x68] sm:$0xff]
  %v44 = vld [vmem:[%s0 + $0x70] sm:$0xff]
  %v45 = vld [vmem:[%s0 + $0x78] sm:$0xff]
  %v46 = vld [vmem:[%s1] sm:$0xff]
  %v47 = vld [vmem:[%s1 + $0x8] sm:$0xff]
  %v48 = vld [vmem:[%s1 + $0x10] sm:$0xff]
  %v49 = vld [vmem:[%s1 + $0x18] sm:$0xff]
  %v50 = vld [vmem:[%s1 + $0x20] sm:$0xff]
  %v51 = vld [vmem:[%s1 + $0x28] sm:$0xff]
  %v52 = vld [vmem:[%s1 + $0x30] sm:$0xff]
  %v53 = vld [vmem:[%s1 + $0x38] sm:$0xff]
  %v54 = vld [vmem:[%s1 + $0x40] sm:$0xff]
  %v55 = vld [vmem:[%s1 + $0x48] sm:$0xff]
  %v56 = vld [vmem:[%s1 + $0x50] sm:$0xff]
  %v57 = vld [vmem:[%s1 + $0x58] sm:$0xff]
  %v58 = vld [vmem:[%s1 + $0x60] sm:$0xff]
  %v59 = vld [vmem:[%s1 + $0x68] sm:$0xff]
  %v60 = vld [vmem:[%s1 + $0x70] sm:$0xff]
  %v61 = vld [vmem:[%s1 + $0x78] sm:$0xff]
  %vm62 = vcmask 64512
  %v64 = vsel %vm62, %v46, 0
  %v67 = vsel %vm62, %v47, 0
  %v70 = vsel %vm62, %v48, 0
  %v73 = vsel %vm62, %v49, 0
  %v76 = vsel %vm62, %v50, 0
  %v79 = vsel %vm62, %v51, 0
  %v82 = vsel %vm62, %v52, 0
  %v85 = vsel %vm62, %v53, 0
  %v88 = vsel %vm62, %v54, 0
  %v91 = vsel %vm62, %v55, 0
  %v94 = vsel %vm62, %v56, 0
  %v97 = vsel %vm62, %v57, 0
  %v100 = vsel %vm62, %v58, 0
  %v103 = vsel %vm62, %v59, 0
  %v106 = vsel %vm62, %v60, 0
  %v109 = vsel %vm62, %v61, 0
  %111 = vmatpush.msra.mxu0 0.0
  %112 = vmatpush.msra.mxu0 0.0
  %113 = vmatpush.msra.mxu0 0.0
  %114 = vmatpush.msra.mxu0 0.0
  %115 = vmatpush.msra.mxu0 0.0
  %116 = vmatpush.msra.mxu0 0.0
  %117 = vmatpush.msra.mxu0 0.0
  %118 = vmatpush.msra.mxu0 0.0
  %119 = vmatpush.msra.mxu0 0.0
  %120 = vmatpush.msra.mxu0 0.0
  %121 = vmatpush.msra.mxu0 0.0
  %122 = vmatpush.msra.mxu0 0.0
  %123 = vmatpush.msra.mxu0 0.0
  %124 = vmatpush.msra.mxu0 0.0
  %125 = vmatpush.msra.mxu0 0.0
  %126 = vmatpush.msra.mxu0 %v22
  %127 = vmatmul.f32.gmra.mxu0 %v64
  %v128 = vpop.f32.mrf.mxu0
  %v129 = vadd.f32 0.0, %v128
  %130 = vmatmul.f32.gmra.mxu0 %v67
  %v131 = vpop.f32.mrf.mxu0
  %v132 = vadd.f32 0.0, %v131
  %133 = vmatmul.f32.gmra.mxu0 %v70
  %v134 = vpop.f32.mrf.mxu0
  %v135 = vadd.f32 0.0, %v134
  %136 = vmatmul.f32.gmra.mxu0 %v73
  %v137 = vpop.f32.mrf.mxu0
  %v138 = vadd.f32 0.0, %v137
  %139 = vmatmul.f32.gmra.mxu0 %v76
  %v140 = vpop.f32.mrf.mxu0
  %v141 = vadd.f32 0.0, %v140
  %142 = vmatmul.f32.gmra.mxu0 %v79
  %v143 = vpop.f32.mrf.mxu0
  %v144 = vadd.f32 0.0, %v143
  %145 = vmatmul.f32.gmra.mxu0 %v82
  %v146 = vpop.f32.mrf.mxu0
  %v147 = vadd.f32 0.0, %v146
  %148 = vmatmul.f32.gmra.mxu0 %v85
  %v149 = vpop.f32.mrf.mxu0
  %v150 = vadd.f32 0.0, %v149
  %151 = vmatmul.f32.gmra.mxu0 %v88
  %v152 = vpop.f32.mrf.mxu0
  %v153 = vadd.f32 0.0, %v152
  %154 = vmatmul.f32.gmra.mxu0 %v91
  %v155 = vpop.f32.mrf.mxu0
  %v156 = vadd.f32 0.0, %v155
  %157 = vmatmul.f32.gmra.mxu0 %v94
  %v158 = vpop.f32.mrf.mxu0
  %v159 = vadd.f32 0.0, %v158
  %160 = vmatmul.f32.gmra.mxu0 %v97
  %v161 = vpop.f32.mrf.mxu0
  %v162 = vadd.f32 0.0, %v161
  %163 = vmatmul.f32.gmra.mxu0 %v100
  %v164 = vpop.f32.mrf.mxu0
  %v165 = vadd.f32 0.0, %v164
  %166 = vmatmul.f32.gmra.mxu0 %v103
  %v167 = vpop.f32.mrf.mxu0
  %v168 = vadd.f32 0.0, %v167
  %169 = vmatmul.f32.gmra.mxu0 %v106
  %v170 = vpop.f32.mrf.mxu0
  %v171 = vadd.f32 0.0, %v170
  %172 = vmatmul.f32.gmra.mxu0 %v109
  %v173 = vpop.f32.mrf.mxu0
  %v174 = vadd.f32 0.0, %v173
  %175 = vdwg.mxu0
  %vm176 = vcmask 130048
  %v178 = vsel %vm176, %v30, 0
  %v181 = vsel %vm176, %v31, 0
  %v184 = vsel %vm176, %v32, 0
  %v187 = vsel %vm176, %v33, 0
  %v190 = vsel %vm176, %v34, 0
  %v193 = vsel %vm176, %v35, 0
  %v196 = vsel %vm176, %v36, 0
  %v199 = vsel %vm176, %v37, 0
  %v202 = vsel %vm176, %v38, 0
  %v205 = vsel %vm176, %v39, 0
  %v208 = vsel %vm176, %v40, 0
  %v211 = vsel %vm176, %v41, 0
  %v214 = vsel %vm176, %v42, 0
  %v217 = vsel %vm176, %v43, 0
  %v220 = vsel %vm176, %v44, 0
  %v223 = vsel %vm176, %v45, 0
  %225 = vmatpush.msra.mxu0 0.0
  %226 = vmatpush.msra.mxu0 0.0
  %227 = vmatpush.msra.mxu0 0.0
  %228 = vmatpush.msra.mxu0 0.0
  %229 = vmatpush.msra.mxu0 0.0
  %230 = vmatpush.msra.mxu0 0.0
  %231 = vmatpush.msra.mxu0 0.0
  %232 = vmatpush.msra.mxu0 0.0
  %233 = vmatpush.msra.mxu0 0.0
  %234 = vmatpush.msra.mxu0 0.0
  %235 = vmatpush.msra.mxu0 0.0
  %236 = vmatpush.msra.mxu0 0.0
  %237 = vmatpush.msra.mxu0 0.0
  %238 = vmatpush.msra.mxu0 0.0
  %239 = vmatpush.msra.mxu0 %v21
  %240 = vmatpush.msra.mxu0 %v20
  %241 = vmatmul.f32.gmra.mxu0 %v178
  %v242 = vpop.f32.mrf.mxu0
  %v243 = vadd.f32 %v129, %v242
  %244 = vmatmul.f32.gmra.mxu0 %v181
  %v245 = vpop.f32.mrf.mxu0
  %v246 = vadd.f32 %v132, %v245
  %247 = vmatmul.f32.gmra.mxu0 %v184
  %v248 = vpop.f32.mrf.mxu0
  %v249 = vadd.f32 %v135, %v248
  %250 = vmatmul.f32.gmra.mxu0 %v187
  %v251 = vpop.f32.mrf.mxu0
  %v252 = vadd.f32 %v138, %v251
  %253 = vmatmul.f32.gmra.mxu0 %v190
  %v254 = vpop.f32.mrf.mxu0
  %v255 = vadd.f32 %v141, %v254
  %256 = vmatmul.f32.gmra.mxu0 %v193
  %v257 = vpop.f32.mrf.mxu0
  %v258 = vadd.f32 %v144, %v257
  %259 = vmatmul.f32.gmra.mxu0 %v196
  %v260 = vpop.f32.mrf.mxu0
  %v261 = vadd.f32 %v147, %v260
  %262 = vmatmul.f32.gmra.mxu0 %v199
  %v263 = vpop.f32.mrf.mxu0
  %v264 = vadd.f32 %v150, %v263
  %265 = vmatmul.f32.gmra.mxu0 %v202
  %v266 = vpop.f32.mrf.mxu0
  %v267 = vadd.f32 %v153, %v266
  %268 = vmatmul.f32.gmra.mxu0 %v205
  %v269 = vpop.f32.mrf.mxu0
  %v270 = vadd.f32 %v156, %v269
  %271 = vmatmul.f32.gmra.mxu0 %v208
  %v272 = vpop.f32.mrf.mxu0
  %v273 = vadd.f32 %v159, %v272
  %274 = vmatmul.f32.gmra.mxu0 %v211
  %v275 = vpop.f32.mrf.mxu0
  %v276 = vadd.f32 %v162, %v275
  %277 = vmatmul.f32.gmra.mxu0 %v214
  %v278 = vpop.f32.mrf.mxu0
  %v279 = vadd.f32 %v165, %v278
  %280 = vmatmul.f32.gmra.mxu0 %v217
  %v281 = vpop.f32.mrf.mxu0
  %v282 = vadd.f32 %v168, %v281
  %283 = vmatmul.f32.gmra.mxu0 %v220
  %v284 = vpop.f32.mrf.mxu0
  %v285 = vadd.f32 %v171, %v284
  %286 = vmatmul.f32.gmra.mxu0 %v223
  %v287 = vpop.f32.mrf.mxu0
  %v288 = vadd.f32 %v174, %v287
  %289 = vdwg.mxu0
  %v290 = vld [vmem:[%s2] sm:$0xff]
  %v291 = vld [vmem:[%s2 + $0x8] sm:$0xff]
  %v292 = vld [vmem:[%s2 + $0x10] sm:$0xff]
  %v293 = vld [vmem:[%s2 + $0x18] sm:$0xff]
  %v294 = vld [vmem:[%s2 + $0x20] sm:$0xff]
  %v295 = vld [vmem:[%s2 + $0x28] sm:$0xff]
  %v296 = vld [vmem:[%s2 + $0x30] sm:$0xff]
  %v297 = vld [vmem:[%s2 + $0x38] sm:$0xff]
  %v298 = vld [vmem:[%s2 + $0x40] sm:$0xff]
  %v299 = vld [vmem:[%s2 + $0x48] sm:$0xff]
  %v300 = vld [vmem:[%s2 + $0x50] sm:$0xff]
  %v301 = vld [vmem:[%s2 + $0x58] sm:$0xff]
  %v302 = vld [vmem:[%s2 + $0x60] sm:$0xff]
  %v303 = vld [vmem:[%s2 + $0x68] sm:$0xff]
  %v304 = vld [vmem:[%s2 + $0x70] sm:$0xff]
  %v305 = vld [vmem:[%s2 + $0x78] sm:$0xff]
  %v307 = vsel %vm62, %v290, 0
  %v310 = vsel %vm62, %v291, 0
  %v313 = vsel %vm62, %v292, 0
  %v316 = vsel %vm62, %v293, 0
  %v319 = vsel %vm62, %v294, 0
  %v322 = vsel %vm62, %v295, 0
  %v325 = vsel %vm62, %v296, 0
  %v328 = vsel %vm62, %v297, 0
  %v331 = vsel %vm62, %v298, 0
  %v334 = vsel %vm62, %v299, 0
  %v337 = vsel %vm62, %v300, 0
  %v340 = vsel %vm62, %v301, 0
  %v343 = vsel %vm62, %v302, 0
  %v346 = vsel %vm62, %v303, 0
  %v349 = vsel %vm62, %v304, 0
  %v352 = vsel %vm62, %v305, 0
  %354 = vmatpush.msra.mxu0 0.0
  %355 = vmatpush.msra.mxu0 0.0
  %356 = vmatpush.msra.mxu0 0.0
  %357 = vmatpush.msra.mxu0 0.0
  %358 = vmatpush.msra.mxu0 0.0
  %359 = vmatpush.msra.mxu0 0.0
  %360 = vmatpush.msra.mxu0 0.0
  %361 = vmatpush.msra.mxu0 0.0
  %362 = vmatpush.msra.mxu0 0.0
  %363 = vmatpush.msra.mxu0 0.0
  %364 = vmatpush.msra.mxu0 0.0
  %365 = vmatpush.msra.mxu0 0.0
  %366 = vmatpush.msra.mxu0 0.0
  %367 = vmatpush.msra.mxu0 0.0
  %368 = vmatpush.msra.mxu0 0.0
  %369 = vmatpush.msra.mxu0 %v23
  %370 = vmatmul.f32.gmra.mxu0 %v307
  %v371 = vpop.f32.mrf.mxu0
  %v372 = vadd.f32 0.0, %v371
  %373 = vmatmul.f32.gmra.mxu0 %v310
  %v374 = vpop.f32.mrf.mxu0
  %v375 = vadd.f32 0.0, %v374
  %376 = vmatmul.f32.gmra.mxu0 %v313
  %v377 = vpop.f32.mrf.mxu0
  %v378 = vadd.f32 0.0, %v377
  %379 = vmatmul.f32.gmra.mxu0 %v316
  %v380 = vpop.f32.mrf.mxu0
  %v381 = vadd.f32 0.0, %v380
  %382 = vmatmul.f32.gmra.mxu0 %v319
  %v383 = vpop.f32.mrf.mxu0
  %v384 = vadd.f32 0.0, %v383
  %385 = vmatmul.f32.gmra.mxu0 %v322
  %v386 = vpop.f32.mrf.mxu0
  %v387 = vadd.f32 0.0, %v386
  %388 = vmatmul.f32.gmra.mxu0 %v325
  %v389 = vpop.f32.mrf.mxu0
  %v390 = vadd.f32 0.0, %v389
  %391 = vmatmul.f32.gmra.mxu0 %v328
  %v392 = vpop.f32.mrf.mxu0
  %v393 = vadd.f32 0.0, %v392
  %394 = vmatmul.f32.gmra.mxu0 %v331
  %v395 = vpop.f32.mrf.mxu0
  %v396 = vadd.f32 0.0, %v395
  %397 = vmatmul.f32.gmra.mxu0 %v334
  %v398 = vpop.f32.mrf.mxu0
  %v399 = vadd.f32 0.0, %v398
  %400 = vmatmul.f32.gmra.mxu0 %v337
  %v401 = vpop.f32.mrf.mxu0
  %v402 = vadd.f32 0.0, %v401
  %403 = vmatmul.f32.gmra.mxu0 %v340
  %v404 = vpop.f32.mrf.mxu0
  %v405 = vadd.f32 0.0, %v404
  %406 = vmatmul.f32.gmra.mxu0 %v343
  %v407 = vpop.f32.mrf.mxu0
  %v408 = vadd.f32 0.0, %v407
  %409 = vmatmul.f32.gmra.mxu0 %v346
  %v410 = vpop.f32.mrf.mxu0
  %v411 = vadd.f32 0.0, %v410
  %412 = vmatmul.f32.gmra.mxu0 %v349
  %v413 = vpop.f32.mrf.mxu0
  %v414 = vadd.f32 0.0, %v413
  %415 = vmatmul.f32.gmra.mxu0 %v352
  %v416 = vpop.f32.mrf.mxu0
  %v417 = vadd.f32 0.0, %v416
  %418 = vdwg.mxu0
  %v419 = vadd.f32 %v243, %v372
  %v420 = vadd.f32 %v246, %v375
  %v421 = vadd.f32 %v249, %v378
  %v422 = vadd.f32 %v252, %v381
  %v423 = vadd.f32 %v255, %v384
  %v424 = vadd.f32 %v258, %v387
  %v425 = vadd.f32 %v261, %v390
  %v426 = vadd.f32 %v264, %v393
  %v427 = vadd.f32 %v267, %v396
  %v428 = vadd.f32 %v270, %v399
  %v429 = vadd.f32 %v273, %v402
  %v430 = vadd.f32 %v276, %v405
  %v431 = vadd.f32 %v279, %v408
  %v432 = vadd.f32 %v282, %v411
  %v433 = vadd.f32 %v285, %v414
  %v434 = vadd.f32 %v288, %v417
  %v435 = vperm.slane %v24, 0
  %v436 = vadd.f32 %v419, %v435
  %v437 = vadd.f32 %v420, %v435
  %v438 = vadd.f32 %v421, %v435
  %v439 = vadd.f32 %v422, %v435
  %v440 = vadd.f32 %v423, %v435
  %v441 = vadd.f32 %v424, %v435
  %v442 = vadd.f32 %v425, %v435
  %v443 = vadd.f32 %v426, %v435
  %v444 = vadd.f32 %v427, %v435
  %v445 = vadd.f32 %v428, %v435
  %v446 = vadd.f32 %v429, %v435
  %v447 = vadd.f32 %v430, %v435
  %v448 = vadd.f32 %v431, %v435
  %v449 = vadd.f32 %v432, %v435
  %v450 = vadd.f32 %v433, %v435
  %v451 = vadd.f32 %v434, %v435
  %v452 = vmax.f32 %v436, 0.0
  %v453 = vmax.f32 %v437, 0.0
  %v454 = vmax.f32 %v438, 0.0
  %v455 = vmax.f32 %v439, 0.0
  %v456 = vmax.f32 %v440, 0.0
  %v457 = vmax.f32 %v441, 0.0
  %v458 = vmax.f32 %v442, 0.0
  %v459 = vmax.f32 %v443, 0.0
  %v460 = vmax.f32 %v444, 0.0
  %v461 = vmax.f32 %v445, 0.0
  %v462 = vmax.f32 %v446, 0.0
  %v463 = vmax.f32 %v447, 0.0
  %v464 = vmax.f32 %v448, 0.0
  %v465 = vmax.f32 %v449, 0.0
  %v466 = vmax.f32 %v450, 0.0
  %v467 = vmax.f32 %v451, 0.0
  %v468 = vperm.slane %v29, 0
  %vm469 = vcmask 261120
  %v471 = vsel %vm469, %v452, 0
  %v474 = vsel %vm469, %v453, 0
  %v477 = vsel %vm469, %v454, 0
  %v480 = vsel %vm469, %v455, 0
  %v483 = vsel %vm469, %v456, 0
  %v486 = vsel %vm469, %v457, 0
  %v489 = vsel %vm469, %v458, 0
  %v492 = vsel %vm469, %v459, 0
  %v495 = vsel %vm469, %v460, 0
  %v498 = vsel %vm469, %v461, 0
  %v501 = vsel %vm469, %v462, 0
  %v504 = vsel %vm469, %v463, 0
  %v507 = vsel %vm469, %v464, 0
  %v510 = vsel %vm469, %v465, 0
  %v513 = vsel %vm469, %v466, 0
  %v516 = vsel %vm469, %v467, 0
  %518 = vmatpush.msra.mxu0 0.0
  %519 = vmatpush.msra.mxu0 0.0
  %520 = vmatpush.msra.mxu0 0.0
  %521 = vmatpush.msra.mxu0 0.0
  %522 = vmatpush.msra.mxu0 0.0
  %523 = vmatpush.msra.mxu0 0.0
  %524 = vmatpush.msra.mxu0 0.0
  %525 = vmatpush.msra.mxu0 0.0
  %526 = vmatpush.msra.mxu0 0.0
  %527 = vmatpush.msra.mxu0 0.0
  %528 = vmatpush.msra.mxu0 0.0
  %529 = vmatpush.msra.mxu0 0.0
  %530 = vmatpush.msra.mxu0 %v28
  %531 = vmatpush.msra.mxu0 %v27
  %532 = vmatpush.msra.mxu0 %v26
  %533 = vmatpush.msra.mxu0 %v25
  %534 = vmatmul.f32.gmra.mxu0 %v471
  %v535 = vpop.f32.mrf.mxu0
  %v536 = vadd.f32 %v468, %v535
  %537 = vmatmul.f32.gmra.mxu0 %v474
  %v538 = vpop.f32.mrf.mxu0
  %v539 = vadd.f32 %v468, %v538
  %540 = vmatmul.f32.gmra.mxu0 %v477
  %v541 = vpop.f32.mrf.mxu0
  %v542 = vadd.f32 %v468, %v541
  %543 = vmatmul.f32.gmra.mxu0 %v480
  %v544 = vpop.f32.mrf.mxu0
  %v545 = vadd.f32 %v468, %v544
  %546 = vmatmul.f32.gmra.mxu0 %v483
  %v547 = vpop.f32.mrf.mxu0
  %v548 = vadd.f32 %v468, %v547
  %549 = vmatmul.f32.gmra.mxu0 %v486
  %v550 = vpop.f32.mrf.mxu0
  %v551 = vadd.f32 %v468, %v550
  %552 = vmatmul.f32.gmra.mxu0 %v489
  %v553 = vpop.f32.mrf.mxu0
  %v554 = vadd.f32 %v468, %v553
  %555 = vmatmul.f32.gmra.mxu0 %v492
  %v556 = vpop.f32.mrf.mxu0
  %v557 = vadd.f32 %v468, %v556
  %558 = vmatmul.f32.gmra.mxu0 %v495
  %v559 = vpop.f32.mrf.mxu0
  %v560 = vadd.f32 %v468, %v559
  %561 = vmatmul.f32.gmra.mxu0 %v498
  %v562 = vpop.f32.mrf.mxu0
  %v563 = vadd.f32 %v468, %v562
  %564 = vmatmul.f32.gmra.mxu0 %v501
  %v565 = vpop.f32.mrf.mxu0
  %v566 = vadd.f32 %v468, %v565
  %567 = vmatmul.f32.gmra.mxu0 %v504
  %v568 = vpop.f32.mrf.mxu0
  %v569 = vadd.f32 %v468, %v568
  %570 = vmatmul.f32.gmra.mxu0 %v507
  %v571 = vpop.f32.mrf.mxu0
  %v572 = vadd.f32 %v468, %v571
  %573 = vmatmul.f32.gmra.mxu0 %v510
  %v574 = vpop.f32.mrf.mxu0
  %v575 = vadd.f32 %v468, %v574
  %576 = vmatmul.f32.gmra.mxu0 %v513
  %v577 = vpop.f32.mrf.mxu0
  %v578 = vadd.f32 %v468, %v577
  %579 = vmatmul.f32.gmra.mxu0 %v516
  %v580 = vpop.f32.mrf.mxu0
  %v581 = vadd.f32 %v468, %v580
  %582 = vdwg.mxu0
  %v583 = vtanh.pop %v536
  %v584 = vtanh.pop %v539
  %v585 = vtanh.pop %v542
  %v586 = vtanh.pop %v545
  %v587 = vtanh.pop %v548
  %v588 = vtanh.pop %v551
  %v589 = vtanh.pop %v554
  %v590 = vtanh.pop %v557
  %v591 = vtanh.pop %v560
  %v592 = vtanh.pop %v563
  %v593 = vtanh.pop %v566
  %v594 = vtanh.pop %v569
  %v595 = vtanh.pop %v572
  %v596 = vtanh.pop %v575
  %v597 = vtanh.pop %v578
  %v598 = vtanh.pop %v581
  %v599 = vand.u32 2147483647, %v583
  %v600 = vand.u32 2147483647, %v584
  %v601 = vand.u32 2147483647, %v585
  %v602 = vand.u32 2147483647, %v586
  %v603 = vand.u32 2147483647, %v587
  %v604 = vand.u32 2147483647, %v588
  %v605 = vand.u32 2147483647, %v589
  %v606 = vand.u32 2147483647, %v590
  %v607 = vand.u32 2147483647, %v591
  %v608 = vand.u32 2147483647, %v592
  %v609 = vand.u32 2147483647, %v593
  %v610 = vand.u32 2147483647, %v594
  %v611 = vand.u32 2147483647, %v595
  %v612 = vand.u32 2147483647, %v596
  %v613 = vand.u32 2147483647, %v597
  %v614 = vand.u32 2147483647, %v598
  %615 = vadd.xlane.f32.xlu0 %v599
  %v616 = vpop.xlane.xlu0 %615
  %617 = vadd.xlane.f32.xlu0 %v600
  %v618 = vpop.xlane.xlu0 %617
  %619 = vadd.xlane.f32.xlu0 %v601
  %v620 = vpop.xlane.xlu0 %619
  %621 = vadd.xlane.f32.xlu0 %v602
  %v622 = vpop.xlane.xlu0 %621
  %623 = vadd.xlane.f32.xlu0 %v603
  %v624 = vpop.xlane.xlu0 %623
  %625 = vadd.xlane.f32.xlu0 %v604
  %v626 = vpop.xlane.xlu0 %625
  %627 = vadd.xlane.f32.xlu0 %v605
  %v628 = vpop.xlane.xlu0 %627
  %629 = vadd.xlane.f32.xlu0 %v606
  %v630 = vpop.xlane.xlu0 %629
  %631 = vadd.xlane.f32.xlu0 %v607
  %v632 = vpop.xlane.xlu0 %631
  %633 = vadd.xlane.f32.xlu0 %v608
  %v634 = vpop.xlane.xlu0 %633
  %635 = vadd.xlane.f32.xlu0 %v609
  %v636 = vpop.xlane.xlu0 %635
  %637 = vadd.xlane.f32.xlu0 %v610
  %v638 = vpop.xlane.xlu0 %637
  %639 = vadd.xlane.f32.xlu0 %v611
  %v640 = vpop.xlane.xlu0 %639
  %641 = vadd.xlane.f32.xlu0 %v612
  %v642 = vpop.xlane.xlu0 %641
  %643 = vadd.xlane.f32.xlu0 %v613
  %v644 = vpop.xlane.xlu0 %643
  %645 = vadd.xlane.f32.xlu0 %v614
  %v646 = vpop.xlane.xlu0 %645
  %v647 = vadd.f32 %v616, 1e-08
  %v648 = vadd.f32 %v618, 1e-08
  %v649 = vadd.f32 %v620, 1e-08
  %v650 = vadd.f32 %v622, 1e-08
  %v651 = vadd.f32 %v624, 1e-08
  %v652 = vadd.f32 %v626, 1e-08
  %v653 = vadd.f32 %v628, 1e-08
  %v654 = vadd.f32 %v630, 1e-08
  %v655 = vadd.f32 %v632, 1e-08
  %v656 = vadd.f32 %v634, 1e-08
  %v657 = vadd.f32 %v636, 1e-08
  %v658 = vadd.f32 %v638, 1e-08
  %v659 = vadd.f32 %v640, 1e-08
  %v660 = vadd.f32 %v642, 1e-08
  %v661 = vadd.f32 %v644, 1e-08
  %v662 = vadd.f32 %v646, 1e-08
  %v663 = vrcp.pop %v647
  %v664 = vmul.f32 %v647, %v663
  %v665 = vsub.f32 1.0, %v664
  %v666 = vmul.f32 %v663, %v665
  %v667 = vadd.f32 %v663, %v666
  %vm668 = vweird.f32 %v647
  %vm669 = vweird.f32 %v663
  %vm670 = vmor %vm668, %vm669
  %v671 = vsel %vm670, %v663, %v667
  %v672 = vand.u32 2147483647, %v647
  %vm673 = vcmp.eq.f32.partialorder %v672, 8.507059e+37
  %v674 = vand.u32 %v647, 2147483648
  %v675 = vor.u32 1.1754944e-38, %v674
  %v676 = vsel %vm673, %v675, %v671
  %v677 = vrcp.pop %v648
  %v678 = vmul.f32 %v648, %v677
  %v679 = vsub.f32 1.0, %v678
  %v680 = vmul.f32 %v677, %v679
  %v681 = vadd.f32 %v677, %v680
  %vm682 = vweird.f32 %v648
  %vm683 = vweird.f32 %v677
  %vm684 = vmor %vm682, %vm683
  %v685 = vsel %vm684, %v677, %v681
  %v686 = vand.u32 2147483647, %v648
  %vm687 = vcmp.eq.f32.partialorder %v686, 8.507059e+37
  %v688 = vand.u32 %v648, 2147483648
  %v689 = vor.u32 1.1754944e-38, %v688
  %v690 = vsel %vm687, %v689, %v685
  %v691 = vrcp.pop %v649
  %v692 = vmul.f32 %v649, %v691
  %v693 = vsub.f32 1.0, %v692
  %v694 = vmul.f32 %v691, %v693
  %v695 = vadd.f32 %v691, %v694
  %vm696 = vweird.f32 %v649
  %vm697 = vweird.f32 %v691
  %vm698 = vmor %vm696, %vm697
  %v699 = vsel %vm698, %v691, %v695
  %v700 = vand.u32 2147483647, %v649
  %vm701 = vcmp.eq.f32.partialorder %v700, 8.507059e+37
  %v702 = vand.u32 %v649, 2147483648
  %v703 = vor.u32 1.1754944e-38, %v702
  %v704 = vsel %vm701, %v703, %v699
  %v705 = vrcp.pop %v650
  %v706 = vmul.f32 %v650, %v705
  %v707 = vsub.f32 1.0, %v706
  %v708 = vmul.f32 %v705, %v707
  %v709 = vadd.f32 %v705, %v708
  %vm710 = vweird.f32 %v650
  %vm711 = vweird.f32 %v705
  %vm712 = vmor %vm710, %vm711
  %v713 = vsel %vm712, %v705, %v709
  %v714 = vand.u32 2147483647, %v650
  %vm715 = vcmp.eq.f32.partialorder %v714, 8.507059e+37
  %v716 = vand.u32 %v650, 2147483648
  %v717 = vor.u32 1.1754944e-38, %v716
  %v718 = vsel %vm715, %v717, %v713
  %v719 = vrcp.pop %v651
  %v720 = vmul.f32 %v651, %v719
  %v721 = vsub.f32 1.0, %v720
  %v722 = vmul.f32 %v719, %v721
  %v723 = vadd.f32 %v719, %v722
  %vm724 = vweird.f32 %v651
  %vm725 = vweird.f32 %v719
  %vm726 = vmor %vm724, %vm725
  %v727 = vsel %vm726, %v719, %v723
  %v728 = vand.u32 2147483647, %v651
  %vm729 = vcmp.eq.f32.partialorder %v728, 8.507059e+37
  %v730 = vand.u32 %v651, 2147483648
  %v731 = vor.u32 1.1754944e-38, %v730
  %v732 = vsel %vm729, %v731, %v727
  %v733 = vrcp.pop %v652
  %v734 = vmul.f32 %v652, %v733
  %v735 = vsub.f32 1.0, %v734
  %v736 = vmul.f32 %v733, %v735
  %v737 = vadd.f32 %v733, %v736
  %vm738 = vweird.f32 %v652
  %vm739 = vweird.f32 %v733
  %vm740 = vmor %vm738, %vm739
  %v741 = vsel %vm740, %v733, %v737
  %v742 = vand.u32 2147483647, %v652
  %vm743 = vcmp.eq.f32.partialorder %v742, 8.507059e+37
  %v744 = vand.u32 %v652, 2147483648
  %v745 = vor.u32 1.1754944e-38, %v744
  %v746 = vsel %vm743, %v745, %v741
  %v747 = vrcp.pop %v653
  %v748 = vmul.f32 %v653, %v747
  %v749 = vsub.f32 1.0, %v748
  %v750 = vmul.f32 %v747, %v749
  %v751 = vadd.f32 %v747, %v750
  %vm752 = vweird.f32 %v653
  %vm753 = vweird.f32 %v747
  %vm754 = vmor %vm752, %vm753
  %v755 = vsel %vm754, %v747, %v751
  %v756 = vand.u32 2147483647, %v653
  %vm757 = vcmp.eq.f32.partialorder %v756, 8.507059e+37
  %v758 = vand.u32 %v653, 2147483648
  %v759 = vor.u32 1.1754944e-38, %v758
  %v760 = vsel %vm757, %v759, %v755
  %v761 = vrcp.pop %v654
  %v762 = vmul.f32 %v654, %v761
  %v763 = vsub.f32 1.0, %v762
  %v764 = vmul.f32 %v761, %v763
  %v765 = vadd.f32 %v761, %v764
  %vm766 = vweird.f32 %v654
  %vm767 = vweird.f32 %v761
  %vm768 = vmor %vm766, %vm767
  %v769 = vsel %vm768, %v761, %v765
  %v770 = vand.u32 2147483647, %v654
  %vm771 = vcmp.eq.f32.partialorder %v770, 8.507059e+37
  %v772 = vand.u32 %v654, 2147483648
  %v773 = vor.u32 1.1754944e-38, %v772
  %v774 = vsel %vm771, %v773, %v769
  %v775 = vrcp.pop %v655
  %v776 = vmul.f32 %v655, %v775
  %v777 = vsub.f32 1.0, %v776
  %v778 = vmul.f32 %v775, %v777
  %v779 = vadd.f32 %v775, %v778
  %vm780 = vweird.f32 %v655
  %vm781 = vweird.f32 %v775
  %vm782 = vmor %vm780, %vm781
  %v783 = vsel %vm782, %v775, %v779
  %v784 = vand.u32 2147483647, %v655
  %vm785 = vcmp.eq.f32.partialorder %v784, 8.507059e+37
  %v786 = vand.u32 %v655, 2147483648
  %v787 = vor.u32 1.1754944e-38, %v786
  %v788 = vsel %vm785, %v787, %v783
  %v789 = vrcp.pop %v656
  %v790 = vmul.f32 %v656, %v789
  %v791 = vsub.f32 1.0, %v790
  %v792 = vmul.f32 %v789, %v791
  %v793 = vadd.f32 %v789, %v792
  %vm794 = vweird.f32 %v656
  %vm795 = vweird.f32 %v789
  %vm796 = vmor %vm794, %vm795
  %v797 = vsel %vm796, %v789, %v793
  %v798 = vand.u32 2147483647, %v656
  %vm799 = vcmp.eq.f32.partialorder %v798, 8.507059e+37
  %v800 = vand.u32 %v656, 2147483648
  %v801 = vor.u32 1.1754944e-38, %v800
  %v802 = vsel %vm799, %v801, %v797
  %v803 = vrcp.pop %v657
  %v804 = vmul.f32 %v657, %v803
  %v805 = vsub.f32 1.0, %v804
  %v806 = vmul.f32 %v803, %v805
  %v807 = vadd.f32 %v803, %v806
  %vm808 = vweird.f32 %v657
  %vm809 = vweird.f32 %v803
  %vm810 = vmor %vm808, %vm809
  %v811 = vsel %vm810, %v803, %v807
  %v812 = vand.u32 2147483647, %v657
  %vm813 = vcmp.eq.f32.partialorder %v812, 8.507059e+37
  %v814 = vand.u32 %v657, 2147483648
  %v815 = vor.u32 1.1754944e-38, %v814
  %v816 = vsel %vm813, %v815, %v811
  %v817 = vrcp.pop %v658
  %v818 = vmul.f32 %v658, %v817
  %v819 = vsub.f32 1.0, %v818
  %v820 = vmul.f32 %v817, %v819
  %v821 = vadd.f32 %v817, %v820
  %vm822 = vweird.f32 %v658
  %vm823 = vweird.f32 %v817
  %vm824 = vmor %vm822, %vm823
  %v825 = vsel %vm824, %v817, %v821
  %v826 = vand.u32 2147483647, %v658
  %vm827 = vcmp.eq.f32.partialorder %v826, 8.507059e+37
  %v828 = vand.u32 %v658, 2147483648
  %v829 = vor.u32 1.1754944e-38, %v828
  %v830 = vsel %vm827, %v829, %v825
  %v831 = vrcp.pop %v659
  %v832 = vmul.f32 %v659, %v831
  %v833 = vsub.f32 1.0, %v832
  %v834 = vmul.f32 %v831, %v833
  %v835 = vadd.f32 %v831, %v834
  %vm836 = vweird.f32 %v659
  %vm837 = vweird.f32 %v831
  %vm838 = vmor %vm836, %vm837
  %v839 = vsel %vm838, %v831, %v835
  %v840 = vand.u32 2147483647, %v659
  %vm841 = vcmp.eq.f32.partialorder %v840, 8.507059e+37
  %v842 = vand.u32 %v659, 2147483648
  %v843 = vor.u32 1.1754944e-38, %v842
  %v844 = vsel %vm841, %v843, %v839
  %v845 = vrcp.pop %v660
  %v846 = vmul.f32 %v660, %v845
  %v847 = vsub.f32 1.0, %v846
  %v848 = vmul.f32 %v845, %v847
  %v849 = vadd.f32 %v845, %v848
  %vm850 = vweird.f32 %v660
  %vm851 = vweird.f32 %v845
  %vm852 = vmor %vm850, %vm851
  %v853 = vsel %vm852, %v845, %v849
  %v854 = vand.u32 2147483647, %v660
  %vm855 = vcmp.eq.f32.partialorder %v854, 8.507059e+37
  %v856 = vand.u32 %v660, 2147483648
  %v857 = vor.u32 1.1754944e-38, %v856
  %v858 = vsel %vm855, %v857, %v853
  %v859 = vrcp.pop %v661
  %v860 = vmul.f32 %v661, %v859
  %v861 = vsub.f32 1.0, %v860
  %v862 = vmul.f32 %v859, %v861
  %v863 = vadd.f32 %v859, %v862
  %vm864 = vweird.f32 %v661
  %vm865 = vweird.f32 %v859
  %vm866 = vmor %vm864, %vm865
  %v867 = vsel %vm866, %v859, %v863
  %v868 = vand.u32 2147483647, %v661
  %vm869 = vcmp.eq.f32.partialorder %v868, 8.507059e+37
  %v870 = vand.u32 %v661, 2147483648
  %v871 = vor.u32 1.1754944e-38, %v870
  %v872 = vsel %vm869, %v871, %v867
  %v873 = vrcp.pop %v662
  %v874 = vmul.f32 %v662, %v873
  %v875 = vsub.f32 1.0, %v874
  %v876 = vmul.f32 %v873, %v875
  %v877 = vadd.f32 %v873, %v876
  %vm878 = vweird.f32 %v662
  %vm879 = vweird.f32 %v873
  %vm880 = vmor %vm878, %vm879
  %v881 = vsel %vm880, %v873, %v877
  %v882 = vand.u32 2147483647, %v662
  %vm883 = vcmp.eq.f32.partialorder %v882, 8.507059e+37
  %v884 = vand.u32 %v662, 2147483648
  %v885 = vor.u32 1.1754944e-38, %v884
  %v886 = vsel %vm883, %v885, %v881
  %v887 = vmul.f32 %v583, %v676
  %v888 = vmul.f32 %v584, %v690
  %v889 = vmul.f32 %v585, %v704
  %v890 = vmul.f32 %v586, %v718
  %v891 = vmul.f32 %v587, %v732
  %v892 = vmul.f32 %v588, %v746
  %v893 = vmul.f32 %v589, %v760
  %v894 = vmul.f32 %v590, %v774
  %v895 = vmul.f32 %v591, %v788
  %v896 = vmul.f32 %v592, %v802
  %v897 = vmul.f32 %v593, %v816
  %v898 = vmul.f32 %v594, %v830
  %v899 = vmul.f32 %v595, %v844
  %v900 = vmul.f32 %v596, %v858
  %v901 = vmul.f32 %v597, %v872
  %v902 = vmul.f32 %v598, %v886
  %903 = vst [vmem:[%s5] sm:$0xff] %v887
  %904 = vst [vmem:[%s5 + $0x8] sm:$0xff] %v888
  %905 = vst [vmem:[%s5 + $0x10] sm:$0xff] %v889
  %906 = vst [vmem:[%s5 + $0x18] sm:$0xff] %v890
  %907 = vst [vmem:[%s5 + $0x20] sm:$0xff] %v891
  %908 = vst [vmem:[%s5 + $0x28] sm:$0xff] %v892
  %909 = vst [vmem:[%s5 + $0x30] sm:$0xff] %v893
  %910 = vst [vmem:[%s5 + $0x38] sm:$0xff] %v894
  %911 = vst [vmem:[%s5 + $0x40] sm:$0xff] %v895
  %912 = vst [vmem:[%s5 + $0x48] sm:$0xff] %v896
  %913 = vst [vmem:[%s5 + $0x50] sm:$0xff] %v897
  %914 = vst [vmem:[%s5 + $0x58] sm:$0xff] %v898
  %915 = vst [vmem:[%s5 + $0x60] sm:$0xff] %v899
  %916 = vst [vmem:[%s5 + $0x68] sm:$0xff] %v900
  %917 = vst [vmem:[%s5 + $0x70] sm:$0xff] %v901
  %918 = vst [vmem:[%s5 + $0x78] sm:$0xff] %v902
  // Predicated region
  $region22: #{_forward_impl.1} parent=0 // pred_check
    _
  $region23: #{_forward_impl.1} parent=0 // pred_check_branch
    %920 = sbr.rel (0) target = $region25
  $region24: #{_forward_impl.1} parent=0 // pred_region
    _
  $region25: #{_forward_impl.1} parent=0 // pred_fallthru
    _
  // Predicated region
  $region26: #{_forward_impl.1} parent=0 // pred_check
    _
  $region27: #{_forward_impl.1} parent=0 // pred_check_branch
    %922 = sbr.rel (0) target = $region29
  $region28: #{_forward_impl.1} parent=0 // pred_region
    _
  $region29: #{_forward_impl.1} parent=0 // pred_fallthru
    _

</llo_original>
